<compile_context>
chip_gen: v6e
topology: v6e:2x2x1
jax: 0.10.0
libtpu: 0.0.40
codegen_flags: <defaults>
</compile_context>

<pallas_src>
import math

import jax
import jax.numpy as jnp
import numpy as np
from jax import lax
from jax.experimental import pallas as pl
from jax.experimental.pallas import tpu as pltpu

LN_EPS = 1e-5  # torch.nn.LayerNorm default


def _gelu_exact(x):
    # torch.nn.GELU() default (erf-based, not the tanh approximation)
    return 0.5 * x * (1.0 + lax.erf(x * (1.0 / math.sqrt(2.0))))


# --------------------------------------------------------------------------
# Fused Feedforward kernel (single invocation, lane-dense packed layout).
#
#   x_ref : (Mw, 128)        Mw = B*N/G rows, each row = G tokens of D features
#   s_ref : (128, 128)       block-diag segmented-mean operator (1/D per block)
#   w1_ref: (128, G*DH)      block-diag lift of W1 (D, DH)
#   w2_ref: (G*DH, 128)      block-diag lift of W2 (DH, D)
#   g/bt/b1/b2 refs: (1, lanes) per-token params tiled across the G groups
# --------------------------------------------------------------------------
def ff_kernel(x_ref, g_ref, bt_ref, s_ref, w1_ref, b1_ref, w2_ref, b2_ref, o_ref):
    x = x_ref[...]                                                     # (Mw, 128)

    # Segmented (per-token) LayerNorm statistics, single pass, via the MXU.
    mu = jnp.dot(x, s_ref[...], preferred_element_type=jnp.float32)    # E[x]  per token
    ex2 = jnp.dot(x * x, s_ref[...], preferred_element_type=jnp.float32)  # E[x^2]
    var = jnp.maximum(ex2 - mu * mu, 0.0)
    xn = (x - mu) * lax.rsqrt(var + LN_EPS) * g_ref[...] + bt_ref[...]

    # Linear1 + exact GELU + Linear2 (block-diag weights keep tokens independent).
    h = jnp.dot(xn, w1_ref[...], preferred_element_type=jnp.float32) + b1_ref[...]
    h = _gelu_exact(h)
    y = jnp.dot(h, w2_ref[...], preferred_element_type=jnp.float32) + b2_ref[...]

    o_ref[...] = y.astype(o_ref.dtype)                                  # lane-dense store


def feedforward(x, gamma, beta, w1, b1, w2, b2):
    b, n, d = x.shape
    dh = w1.shape[1]
    # Lane-packing path requires D to divide the 128-lane width.
    # TODO(synk): general-D path (pad or fall back to per-token layout).
    assert 128 % d == 0, "toy lane-packing path assumes dim divides 128"
    g = 128 // d              # tokens packed per 128-lane row
    m = b * n                 # total tokens
    assert m % g == 0
    mw = m // g               # packed rows

    f32 = x.dtype
    # ---- wrapper-side layout plumbing (would be precomputed once in practice) ----
    x_wide = x.reshape(mw, g * d)                         # free row-major repack
    gamma_w = jnp.tile(gamma.reshape(1, d), (1, g))       # (1, 128)
    beta_w = jnp.tile(beta.reshape(1, d), (1, g))         # (1, 128)
    b1_w = jnp.tile(b1.reshape(1, dh), (1, g))            # (1, G*DH)
    b2_w = jnp.tile(b2.reshape(1, d), (1, g))             # (1, 128)
    eye_g = jnp.eye(g, dtype=f32)
    s_mean = jnp.kron(eye_g, jnp.full((d, d), 1.0 / d, f32))   # (128, 128)
    w1_blk = jnp.kron(eye_g, w1)                                # (128, G*DH)
    w2_blk = jnp.kron(eye_g, w2)                                # (G*DH, 128)

    vmem = pl.BlockSpec(memory_space=pltpu.MemorySpace.VMEM)
    out = pl.pallas_call(
        ff_kernel,
        out_shape=jax.ShapeDtypeStruct((mw, g * d), x.dtype),
        in_specs=[vmem] * 8,          # whole arrays VMEM-resident, single step
        out_specs=vmem,
    )(x_wide, gamma_w, beta_w, s_mean, w1_blk, b1_w, w2_blk, b2_w)

    return out.reshape(b, n, d)


# Pure-JAX reference (torch-default math, two-pass variance, HIGHEST precision dots)
def feedforward_ref(x, gamma, beta, w1, b1, w2, b2):
    gamma = gamma.reshape(-1)
    beta = beta.reshape(-1)
    b1 = b1.reshape(-1)
    b2 = b2.reshape(-1)
    mu = jnp.mean(x, axis=-1, keepdims=True)
    var = jnp.mean((x - mu) ** 2, axis=-1, keepdims=True)
    xn = (x - mu) * lax.rsqrt(var + LN_EPS) * gamma + beta
    h = jnp.dot(xn, w1, precision=lax.Precision.HIGHEST) + b1
    h = _gelu_exact(h)
    return jnp.dot(h, w2, precision=lax.Precision.HIGHEST) + b2


if __name__ == "__main__":
    # Feedforward(dim=32, dim_hidden=64) applied to tokens shaped (batch, seq, dim)
    B, N, DIM, DIM_HIDDEN = 2, 8, 32, 64

    key = jax.random.PRNGKey(0)
    kx, k1, k2, k3, k4, k5, k6 = jax.random.split(key, 7)
    x = jax.random.normal(kx, (B, N, DIM), jnp.float32)
    gamma = 1.0 + 0.1 * jax.random.normal(k1, (1, DIM), jnp.float32)
    beta = 0.1 * jax.random.normal(k2, (1, DIM), jnp.float32)
    w1 = 0.1 * jax.random.normal(k3, (DIM, DIM_HIDDEN), jnp.float32)
    b1 = 0.1 * jax.random.normal(k4, (1, DIM_HIDDEN), jnp.float32)
    w2 = 0.1 * jax.random.normal(k5, (DIM_HIDDEN, DIM), jnp.float32)
    b2 = 0.1 * jax.random.normal(k6, (1, DIM), jnp.float32)

    ref = feedforward_ref(x, gamma, beta, w1, b1, w2, b2)

    out = feedforward(x, gamma, beta, w1, b1, w2, b2)
    out = jax.block_until_ready(out)

    if not np.allclose(np.asarray(out), np.asarray(ref), atol=1e-3, rtol=1e-3):
        raise AssertionError("Pallas output mismatch vs JAX reference")

    print("KERNEL_OK")
</pallas_src>

<mosaic_0001>
module attributes {stable_mosaic.version = 11 : i64} {
  func.func @ff_kernel(%arg0: memref<4x128xf32, #tpu.memory_space<vmem>>, %arg1: memref<1x128xf32, #tpu.memory_space<vmem>>, %arg2: memref<1x128xf32, #tpu.memory_space<vmem>>, %arg3: memref<128x128xf32, #tpu.memory_space<vmem>>, %arg4: memref<128x256xf32, #tpu.memory_space<vmem>>, %arg5: memref<1x256xf32, #tpu.memory_space<vmem>>, %arg6: memref<256x128xf32, #tpu.memory_space<vmem>>, %arg7: memref<1x128xf32, #tpu.memory_space<vmem>>, %arg8: memref<4x128xf32, #tpu.memory_space<vmem>>) attributes {dimension_semantics = [], scalar_prefetch = 0 : i64, scratch_operands = 0 : i64, tpu.core_type = #tpu.core_type<tc>} {
    %c0 = arith.constant 0 : index
    %c0_0 = arith.constant 0 : index
    %0 = vector.load %arg0[%c0, %c0_0] : memref<4x128xf32, #tpu.memory_space<vmem>>, vector<4x128xf32>
    %c0_1 = arith.constant 0 : index
    %c0_2 = arith.constant 0 : index
    %1 = vector.load %arg3[%c0_1, %c0_2] : memref<128x128xf32, #tpu.memory_space<vmem>>, vector<128x128xf32>
    %cst = arith.constant dense<0.000000e+00> : vector<4x128xf32>
    %2 = tpu.matmul %0, %1, %cst {dimension_numbers = #tpu.dot_dimension_numbers<[1], [0], [0], [1], [0, 0, 1, 1], [], []>} : vector<4x128xf32>, vector<128x128xf32>, vector<4x128xf32> -> vector<4x128xf32>
    %3 = arith.mulf %0, %0 : vector<4x128xf32>
    %c0_3 = arith.constant 0 : index
    %c0_4 = arith.constant 0 : index
    %4 = vector.load %arg3[%c0_3, %c0_4] : memref<128x128xf32, #tpu.memory_space<vmem>>, vector<128x128xf32>
    %cst_5 = arith.constant dense<0.000000e+00> : vector<4x128xf32>
    %5 = tpu.matmul %3, %4, %cst_5 {dimension_numbers = #tpu.dot_dimension_numbers<[1], [0], [0], [1], [0, 0, 1, 1], [], []>} : vector<4x128xf32>, vector<128x128xf32>, vector<4x128xf32> -> vector<4x128xf32>
    %6 = arith.mulf %2, %2 : vector<4x128xf32>
    %7 = arith.subf %5, %6 : vector<4x128xf32>
    %cst_6 = arith.constant 0.000000e+00 : f32
    %8 = vector.broadcast %cst_6 : f32 to vector<4x128xf32>
    %9 = arith.maximumf %7, %8 : vector<4x128xf32>
    %10 = arith.subf %0, %2 : vector<4x128xf32>
    %cst_7 = arith.constant 9.99999974E-6 : f32
    %11 = vector.broadcast %cst_7 : f32 to vector<4x128xf32>
    %12 = arith.addf %9, %11 : vector<4x128xf32>
    %13 = math.rsqrt %12 : vector<4x128xf32>
    %14 = arith.mulf %10, %13 : vector<4x128xf32>
    %c0_8 = arith.constant 0 : index
    %c0_9 = arith.constant 0 : index
    %15 = vector.load %arg1[%c0_8, %c0_9] : memref<1x128xf32, #tpu.memory_space<vmem>>, vector<1x128xf32>
    %16 = vector.broadcast %15 : vector<1x128xf32> to vector<4x128xf32>
    %17 = arith.mulf %14, %16 : vector<4x128xf32>
    %c0_10 = arith.constant 0 : index
    %c0_11 = arith.constant 0 : index
    %18 = vector.load %arg2[%c0_10, %c0_11] : memref<1x128xf32, #tpu.memory_space<vmem>>, vector<1x128xf32>
    %19 = vector.broadcast %18 : vector<1x128xf32> to vector<4x128xf32>
    %20 = arith.addf %17, %19 : vector<4x128xf32>
    %c0_12 = arith.constant 0 : index
    %c0_13 = arith.constant 0 : index
    %21 = vector.load %arg4[%c0_12, %c0_13] : memref<128x256xf32, #tpu.memory_space<vmem>>, vector<128x256xf32>
    %cst_14 = arith.constant dense<0.000000e+00> : vector<4x256xf32>
    %22 = tpu.matmul %20, %21, %cst_14 {dimension_numbers = #tpu.dot_dimension_numbers<[1], [0], [0], [1], [0, 0, 1, 1], [], []>} : vector<4x128xf32>, vector<128x256xf32>, vector<4x256xf32> -> vector<4x256xf32>
    %c0_15 = arith.constant 0 : index
    %c0_16 = arith.constant 0 : index
    %23 = vector.load %arg5[%c0_15, %c0_16] : memref<1x256xf32, #tpu.memory_space<vmem>>, vector<1x256xf32>
    %24 = vector.broadcast %23 : vector<1x256xf32> to vector<4x256xf32>
    %25 = arith.addf %22, %24 : vector<4x256xf32>
    %cst_17 = arith.constant 5.000000e-01 : f32
    %26 = vector.broadcast %cst_17 : f32 to vector<4x256xf32>
    %27 = arith.mulf %26, %25 : vector<4x256xf32>
    %cst_18 = arith.constant 0.707106769 : f32
    %28 = vector.broadcast %cst_18 : f32 to vector<4x256xf32>
    %29 = arith.mulf %25, %28 : vector<4x256xf32>
    %30 = math.erf %29 : vector<4x256xf32>
    %cst_19 = arith.constant 1.000000e+00 : f32
    %31 = vector.broadcast %cst_19 : f32 to vector<4x256xf32>
    %32 = arith.addf %31, %30 : vector<4x256xf32>
    %33 = arith.mulf %27, %32 : vector<4x256xf32>
    %c0_20 = arith.constant 0 : index
    %c0_21 = arith.constant 0 : index
    %34 = vector.load %arg6[%c0_20, %c0_21] : memref<256x128xf32, #tpu.memory_space<vmem>>, vector<256x128xf32>
    %cst_22 = arith.constant dense<0.000000e+00> : vector<4x128xf32>
    %35 = tpu.matmul %33, %34, %cst_22 {dimension_numbers = #tpu.dot_dimension_numbers<[1], [0], [0], [1], [0, 0, 1, 1], [], []>} : vector<4x256xf32>, vector<256x128xf32>, vector<4x128xf32> -> vector<4x128xf32>
    %c0_23 = arith.constant 0 : index
    %c0_24 = arith.constant 0 : index
    %36 = vector.load %arg7[%c0_23, %c0_24] : memref<1x128xf32, #tpu.memory_space<vmem>>, vector<1x128xf32>
    %37 = vector.broadcast %36 : vector<1x128xf32> to vector<4x128xf32>
    %38 = arith.addf %35, %37 : vector<4x128xf32>
    %c0_25 = arith.constant 0 : index
    %c0_26 = arith.constant 0 : index
    %39 = vector.load %arg8[%c0_25, %c0_26] : memref<4x128xf32, #tpu.memory_space<vmem>>, vector<4x128xf32>
    tpu.vector_store %arg8[%c0_25, %c0_26], %38 {strides = array<i32>} : memref<4x128xf32, #tpu.memory_space<vmem>>, vector<4x128xf32>,
    return
  }
}

</mosaic_0001>

<llo_original>
// kernel: tpu_custom_call.1
$region0: #{tpu_custom_call.1}
  #allocation0 [shape = 'u32[]', space=smem, size = 0x4, offset = 0x4, fixed_abs, tag = 'smem constant byte address 0x4 - core index']
  #allocation1 [shape = 'u32[144,128]{1,0:T(1,128)}', space=vmem, size = 0x12000, scoped, tag = 'internal scratch']
  %s0 = inlined_call_operand.hbm [shape: f32[4,128], index: 0, kind: input, shape index: {}]
  %s1 = inlined_call_operand.vmem [shape: f32[1,128], index: 1, kind: input, shape index: {}]
  %s2 = inlined_call_operand.hbm [shape: f32[1,128], index: 2, kind: input, shape index: {}]
  %s3 = inlined_call_operand.hbm [shape: f32[128,128], index: 3, kind: input, shape index: {}]
  %s4 = inlined_call_operand.hbm [shape: f32[128,256], index: 4, kind: input, shape index: {}]
  %s5 = inlined_call_operand.vmem [shape: f32[1,256], index: 5, kind: input, shape index: {}]
  %s6 = inlined_call_operand.hbm [shape: f32[256,128], index: 6, kind: input, shape index: {}]
  %s7 = inlined_call_operand.vmem [shape: f32[1,128], index: 7, kind: input, shape index: {}]
  %s8 = inlined_call_operand.hbm [shape: f32[4,128], index: 8, kind: output, shape index: {}]
  %s9 = sld [smem:[#allocation0]]
  $region62: #{tpu_custom_call.1} parent=0
    _
  %s11 = ssub.s32 1, %s9
  %s12 = scalar_select 0, %s11, %s9
  $region1: #{tpu_custom_call.1} parent=0
    #allocation2 [shape = 'u8[2048]{0}', space=vmem, size = 0x800, scoped, tag = 'input window, operand 0, single buffered']
    #allocation3 [shape = 's32[1]{0}', space=sflag, size = 0x4, scoped, tag = 'scoped memory for tpu_custom_call.1']
    #allocation4 [shape = 's32[1]{0}', space=sflag, size = 0x4, scoped, tag = 'scoped memory for tpu_custom_call.1']
    #allocation5 [shape = 'u8[512]{0}', space=vmem, size = 0x400, scoped, tag = 'input window, operand 2, single buffered']
    #allocation6 [shape = 's32[1]{0}', space=sflag, size = 0x4, scoped, tag = 'scoped memory for tpu_custom_call.1']
    #allocation7 [shape = 'u8[65536]{0}', space=vmem, size = 0x10000, scoped, tag = 'input window, operand 3, single buffered']
    #allocation8 [shape = 'u8[131072]{0}', space=vmem, size = 0x20000, scoped, tag = 'input window, operand 4, single buffered']
    #allocation9 [shape = 's32[1]{0}', space=sflag, size = 0x4, scoped, tag = 'scoped memory for tpu_custom_call.1']
    #allocation10 [shape = 'u8[131072]{0}', space=vmem, size = 0x20000, scoped, tag = 'input window, operand 6, single buffered']
    #allocation11 [shape = 'u8[2048]{0}', space=vmem, size = 0x800, scoped, tag = 'output window, operand 0, single buffered']
    %13 = vsyncpa [#allocation3], 0
    %14 = vsyncpa [#allocation6], 0
    %15 = vsyncpa [#allocation9], 0
    %16 = vsyncpa [#allocation4], 0
    // Predicated region
    $region2: #{tpu_custom_call.1} parent=1 // pred_check
      _
    $region3: #{tpu_custom_call.1} parent=1 // pred_check_branch
      %18 = sbr.rel (0) target = $region5
    $region4: #{tpu_custom_call.1} parent=1 // pred_region
      %s20 = ssub.s32 64, 64
      %21 = vsyncadd [#allocation3], %s20
      %s23 = sshll.u32 [#allocation2], 4
      %s24 = int_to_ptr.vmem [resolvable:$true] %s23
      %26 = dma.hbm_to_vmem [thread:$0]  %s0, 64, %s24, [#allocation3]
    $region5: #{tpu_custom_call.1} parent=1 // pred_fallthru
      _
    // Predicated region
    $region6: #{tpu_custom_call.1} parent=1 // pred_check
      _
    $region7: #{tpu_custom_call.1} parent=1 // pred_check_branch
      %28 = sbr.rel (0) target = $region9
    $region8: #{tpu_custom_call.1} parent=1 // pred_region
      _
    $region9: #{tpu_custom_call.1} parent=1 // pred_fallthru
      _
    // Predicated region
    $region10: #{tpu_custom_call.1} parent=1 // pred_check
      _
    $region11: #{tpu_custom_call.1} parent=1 // pred_check_branch
      %30 = sbr.rel (0) target = $region13
    $region12: #{tpu_custom_call.1} parent=1 // pred_region
      %s32 = ssub.s32 16, 16
      %33 = vsyncadd [#allocation6], %s32
      %s35 = sshll.u32 [#allocation5], 4
      %s36 = int_to_ptr.vmem [resolvable:$true] %s35
      %38 = dma.hbm_to_vmem [thread:$0]  %s2, 16, %s36, [#allocation6]
    $region13: #{tpu_custom_call.1} parent=1 // pred_fallthru
      _
    // Predicated region
    $region14: #{tpu_custom_call.1} parent=1 // pred_check
      _
    $region15: #{tpu_custom_call.1} parent=1 // pred_check_branch
      %40 = sbr.rel (0) target = $region17
    $region16: #{tpu_custom_call.1} parent=1 // pred_region
      %s42 = ssub.s32 2048, 2048
      %43 = vsyncadd [#allocation6], %s42
      %s44 = sshll.u32 [#allocation7], 4
      %s45 = int_to_ptr.vmem [resolvable:$true] %s44
      %50 = dma.hbm_to_vmem [thread:$0]  %s3, 2048, %s45, [#allocation6], 128, 128, 8
    $region17: #{tpu_custom_call.1} parent=1 // pred_fallthru
      _
    // Predicated region
    $region18: #{tpu_custom_call.1} parent=1 // pred_check
      _
    $region19: #{tpu_custom_call.1} parent=1 // pred_check_branch
      %52 = sbr.rel (0) target = $region21
    $region20: #{tpu_custom_call.1} parent=1 // pred_region
      %s54 = ssub.s32 4096, 4096
      %55 = vsyncadd [#allocation9], %s54
      %s56 = sshll.u32 [#allocation8], 4
      %s57 = int_to_ptr.vmem [resolvable:$true] %s56
      %62 = dma.hbm_to_vmem [thread:$0]  %s4, 4096, %s57, [#allocation9], 256, 256, 16
    $region21: #{tpu_custom_call.1} parent=1 // pred_fallthru
      _
    // Predicated region
    $region22: #{tpu_custom_call.1} parent=1 // pred_check
      _
    $region23: #{tpu_custom_call.1} parent=1 // pred_check_branch
      %64 = sbr.rel (0) target = $region25
    $region24: #{tpu_custom_call.1} parent=1 // pred_region
      _
    $region25: #{tpu_custom_call.1} parent=1 // pred_fallthru
      _
    // Predicated region
    $region26: #{tpu_custom_call.1} parent=1 // pred_check
      _
    $region27: #{tpu_custom_call.1} parent=1 // pred_check_branch
      %66 = sbr.rel (0) target = $region29
    $region28: #{tpu_custom_call.1} parent=1 // pred_region
      %s68 = ssub.s32 4096, 4096
      %69 = vsyncadd [#allocation9], %s68
      %s70 = sshll.u32 [#allocation10], 4
      %s71 = int_to_ptr.vmem [resolvable:$true] %s70
      %76 = dma.hbm_to_vmem [thread:$0]  %s6, 4096, %s71, [#allocation9], 128, 128, 8
    $region29: #{tpu_custom_call.1} parent=1 // pred_fallthru
      _
    // Predicated region
    $region30: #{tpu_custom_call.1} parent=1 // pred_check
      _
    $region31: #{tpu_custom_call.1} parent=1 // pred_check_branch
      %78 = sbr.rel (0) target = $region33
    $region32: #{tpu_custom_call.1} parent=1 // pred_region
      _
    $region33: #{tpu_custom_call.1} parent=1 // pred_fallthru
      _
    // Predicated region
    $region34: #{tpu_custom_call.1} parent=1 // pred_check
      _
    $region35: #{tpu_custom_call.1} parent=1 // pred_check_branch
      %80 = sbr.rel (0) target = $region37
    $region36: #{tpu_custom_call.1} parent=1 // pred_region
      %81 = dma.done [#allocation3], 64
    $region37: #{tpu_custom_call.1} parent=1 // pred_fallthru
      _
    // Predicated region
    $region38: #{tpu_custom_call.1} parent=1 // pred_check
      _
    $region39: #{tpu_custom_call.1} parent=1 // pred_check_branch
      %83 = sbr.rel (0) target = $region41
    $region40: #{tpu_custom_call.1} parent=1 // pred_region
      %84 = dma.done [#allocation6], 16
    $region41: #{tpu_custom_call.1} parent=1 // pred_fallthru
      _
    // Predicated region
    $region42: #{tpu_custom_call.1} parent=1 // pred_check
      _
    $region43: #{tpu_custom_call.1} parent=1 // pred_check_branch
      %86 = sbr.rel (0) target = $region45
    $region44: #{tpu_custom_call.1} parent=1 // pred_region
      %87 = dma.done [#allocation6], 2048
    $region45: #{tpu_custom_call.1} parent=1 // pred_fallthru
      _
    // Predicated region
    $region46: #{tpu_custom_call.1} parent=1 // pred_check
      _
    $region47: #{tpu_custom_call.1} parent=1 // pred_check_branch
      %89 = sbr.rel (0) target = $region49
    $region48: #{tpu_custom_call.1} parent=1 // pred_region
      %90 = dma.done [#allocation9], 4096
    $region49: #{tpu_custom_call.1} parent=1 // pred_fallthru
      _
    // Predicated region
    $region50: #{tpu_custom_call.1} parent=1 // pred_check
      _
    $region51: #{tpu_custom_call.1} parent=1 // pred_check_branch
      %92 = sbr.rel (0) target = $region53
    $region52: #{tpu_custom_call.1} parent=1 // pred_region
      %93 = dma.done [#allocation9], 4096
    $region53: #{tpu_custom_call.1} parent=1 // pred_fallthru
      _
    %v94 = vld [vmem:[#allocation2] sm:$0xf]
    %v95 = vld [vmem:[#allocation7] sm:$0xff]
    %v96 = vld [vmem:[#allocation7 + $0x8] sm:$0xff]
    %v97 = vld [vmem:[#allocation7 + $0x10] sm:$0xff]
    %v98 = vld [vmem:[#allocation7 + $0x18] sm:$0xff]
    %v99 = vld [vmem:[#allocation7 + $0x20] sm:$0xff]
    %v100 = vld [vmem:[#allocation7 + $0x28] sm:$0xff]
    %v101 = vld [vmem:[#allocation7 + $0x30] sm:$0xff]
    %v102 = vld [vmem:[#allocation7 + $0x38] sm:$0xff]
    %v103 = vld [vmem:[#allocation7 + $0x40] sm:$0xff]
    %v104 = vld [vmem:[#allocation7 + $0x48] sm:$0xff]
    %v105 = vld [vmem:[#allocation7 + $0x50] sm:$0xff]
    %v106 = vld [vmem:[#allocation7 + $0x58] sm:$0xff]
    %v107 = vld [vmem:[#allocation7 + $0x60] sm:$0xff]
    %v108 = vld [vmem:[#allocation7 + $0x68] sm:$0xff]
    %v109 = vld [vmem:[#allocation7 + $0x70] sm:$0xff]
    %v110 = vld [vmem:[#allocation7 + $0x78] sm:$0xff]
    %111 = vmatprep.subr.mxu0 0.0
    %112 = vmatpush1.msra.mxu0 %v110
    %113 = vmatprep.subr.mxu0 0.0
    %114 = vmatpush1.msra.mxu0 %v109
    %115 = vmatprep.subr.mxu0 0.0
    %116 = vmatpush1.msra.mxu0 %v108
    %117 = vmatprep.subr.mxu0 0.0
    %118 = vmatpush1.msra.mxu0 %v107
    %119 = vmatprep.subr.mxu0 0.0
    %120 = vmatpush1.msra.mxu0 %v106
    %121 = vmatprep.subr.mxu0 0.0
    %122 = vmatpush1.msra.mxu0 %v105
    %123 = vmatprep.subr.mxu0 0.0
    %124 = vmatpush1.msra.mxu0 %v104
    %125 = vmatprep.subr.mxu0 0.0
    %126 = vmatpush1.msra.mxu0 %v103
    %127 = vmatprep.subr.mxu0 0.0
    %128 = vmatpush1.msra.mxu0 %v102
    %129 = vmatprep.subr.mxu0 0.0
    %130 = vmatpush1.msra.mxu0 %v101
    %131 = vmatprep.subr.mxu0 0.0
    %132 = vmatpush1.msra.mxu0 %v100
    %133 = vmatprep.subr.mxu0 0.0
    %134 = vmatpush1.msra.mxu0 %v99
    %135 = vmatprep.subr.mxu0 0.0
    %136 = vmatpush1.msra.mxu0 %v98
    %137 = vmatprep.subr.mxu0 0.0
    %138 = vmatpush1.msra.mxu0 %v97
    %139 = vmatprep.subr.mxu0 0.0
    %140 = vmatpush1.msra.mxu0 %v96
    %141 = vmatprep.subr.mxu0 0.0
    %142 = vmatpush1.msra.mxu0 %v95
    %143 = vmatprep.subr.mxu0 0.0
    %144 = vmatpush2.msra.mxu0 0.0
    %145 = vmatprep.subr.mxu0 0.0
    %146 = vmatpush2.msra.mxu0 0.0
    %147 = vmatprep.subr.mxu0 0.0
    %148 = vmatpush2.msra.mxu0 0.0
    %149 = vmatprep.subr.mxu0 0.0
    %150 = vmatpush2.msra.mxu0 0.0
    %151 = vmatprep.subr.mxu0 0.0
    %152 = vmatpush2.msra.mxu0 0.0
    %153 = vmatprep.subr.mxu0 0.0
    %154 = vmatpush2.msra.mxu0 0.0
    %155 = vmatprep.subr.mxu0 0.0
    %156 = vmatpush2.msra.mxu0 0.0
    %157 = vmatprep.subr.mxu0 0.0
    %158 = vmatpush2.msra.mxu0 0.0
    %159 = vmatprep.subr.mxu0 0.0
    %160 = vmatpush2.msra.mxu0 0.0
    %161 = vmatprep.subr.mxu0 0.0
    %162 = vmatpush2.msra.mxu0 0.0
    %163 = vmatprep.subr.mxu0 0.0
    %164 = vmatpush2.msra.mxu0 0.0
    %165 = vmatprep.subr.mxu0 0.0
    %166 = vmatpush2.msra.mxu0 0.0
    %167 = vmatprep.subr.mxu0 0.0
    %168 = vmatpush2.msra.mxu0 0.0
    %169 = vmatprep.subr.mxu0 0.0
    %170 = vmatpush2.msra.mxu0 0.0
    %171 = vmatprep.subr.mxu0 0.0
    %172 = vmatpush2.msra.mxu0 0.0
    %173 = vmatprep.subr.mxu0 0.0
    %174 = vmatpush2.msra.mxu0 0.0
    %175 = vmatprep.mubr.f32.mxu0 0.0
    %176 = vmatmul.mubr.f32.gmra.mxu0 %v94
    %v177 = vpop.f32.mrf.mxu0
    %v178 = vadd.f32 0.0, %v177
    %v179 = vpop.f32.mrf.mxu0
    %180 = vdwg.mxu0
    %v181 = vmul.f32 %v94, %v94
    %182 = vmatprep.subr.mxu0 0.0
    %183 = vmatpush1.msra.mxu0 %v110
    %184 = vmatprep.subr.mxu0 0.0
    %185 = vmatpush1.msra.mxu0 %v109
    %186 = vmatprep.subr.mxu0 0.0
    %187 = vmatpush1.msra.mxu0 %v108
    %188 = vmatprep.subr.mxu0 0.0
    %189 = vmatpush1.msra.mxu0 %v107
    %190 = vmatprep.subr.mxu0 0.0
    %191 = vmatpush1.msra.mxu0 %v106
    %192 = vmatprep.subr.mxu0 0.0
    %193 = vmatpush1.msra.mxu0 %v105
    %194 = vmatprep.subr.mxu0 0.0
    %195 = vmatpush1.msra.mxu0 %v104
    %196 = vmatprep.subr.mxu0 0.0
    %197 = vmatpush1.msra.mxu0 %v103
    %198 = vmatprep.subr.mxu0 0.0
    %199 = vmatpush1.msra.mxu0 %v102
    %200 = vmatprep.subr.mxu0 0.0
    %201 = vmatpush1.msra.mxu0 %v101
    %202 = vmatprep.subr.mxu0 0.0
    %203 = vmatpush1.msra.mxu0 %v100
    %204 = vmatprep.subr.mxu0 0.0
    %205 = vmatpush1.msra.mxu0 %v99
    %206 = vmatprep.subr.mxu0 0.0
    %207 = vmatpush1.msra.mxu0 %v98
    %208 = vmatprep.subr.mxu0 0.0
    %209 = vmatpush1.msra.mxu0 %v97
    %210 = vmatprep.subr.mxu0 0.0
    %211 = vmatpush1.msra.mxu0 %v96
    %212 = vmatprep.subr.mxu0 0.0
    %213 = vmatpush1.msra.mxu0 %v95
    %214 = vmatprep.subr.mxu0 0.0
    %215 = vmatpush2.msra.mxu0 0.0
    %216 = vmatprep.subr.mxu0 0.0
    %217 = vmatpush2.msra.mxu0 0.0
    %218 = vmatprep.subr.mxu0 0.0
    %219 = vmatpush2.msra.mxu0 0.0
    %220 = vmatprep.subr.mxu0 0.0
    %221 = vmatpush2.msra.mxu0 0.0
    %222 = vmatprep.subr.mxu0 0.0
    %223 = vmatpush2.msra.mxu0 0.0
    %224 = vmatprep.subr.mxu0 0.0
    %225 = vmatpush2.msra.mxu0 0.0
    %226 = vmatprep.subr.mxu0 0.0
    %227 = vmatpush2.msra.mxu0 0.0
    %228 = vmatprep.subr.mxu0 0.0
    %229 = vmatpush2.msra.mxu0 0.0
    %230 = vmatprep.subr.mxu0 0.0
    %231 = vmatpush2.msra.mxu0 0.0
    %232 = vmatprep.subr.mxu0 0.0
    %233 = vmatpush2.msra.mxu0 0.0
    %234 = vmatprep.subr.mxu0 0.0
    %235 = vmatpush2.msra.mxu0 0.0
    %236 = vmatprep.subr.mxu0 0.0
    %237 = vmatpush2.msra.mxu0 0.0
    %238 = vmatprep.subr.mxu0 0.0
    %239 = vmatpush2.msra.mxu0 0.0
    %240 = vmatprep.subr.mxu0 0.0
    %241 = vmatpush2.msra.mxu0 0.0
    %242 = vmatprep.subr.mxu0 0.0
    %243 = vmatpush2.msra.mxu0 0.0
    %244 = vmatprep.subr.mxu0 0.0
    %245 = vmatpush2.msra.mxu0 0.0
    %246 = vmatprep.mubr.f32.mxu0 0.0
    %247 = vmatmul.mubr.f32.gmra.mxu0 %v181
    %v248 = vpop.f32.mrf.mxu0
    %v249 = vadd.f32 0.0, %v248
    %v250 = vpop.f32.mrf.mxu0
    %251 = vdwg.mxu0
    %v252 = vmul.f32 %v178, %v178
    %v253 = vsub.f32 %v249, %v252
    %v254 = vmax.f32 %v253, 0.0
    %v255 = vsub.f32 %v94, %v178
    %v256 = vadd.f32 %v254, 1e-05
    %v257 = vrsqrt.pop %v256
    %v258 = vmul.f32 %v255, %v257
    %v259 = vld [vmem:[%s1] sm:$0x1]
    %v261 = vlaneseq
    %v262 = vshrl.u32 %v261, 7
    %v263 = vsub.s32 0, %v262
    %v264 = vrot.slane %v259, %v263
    %v266 = vmul.f32 %v258, %v264
    %v267 = vld [vmem:[#allocation5] sm:$0x1]
    %v269 = vlaneseq
    %v270 = vshrl.u32 %v269, 7
    %v271 = vsub.s32 0, %v270
    %v272 = vrot.slane %v267, %v271
    %v274 = vadd.f32 %v266, %v272
    %v275 = vld [vmem:[#allocation8] sm:$0xff]
    %v276 = vld [vmem:[#allocation8 + $0x8] sm:$0xff]
    %v277 = vld [vmem:[#allocation8 + $0x10] sm:$0xff]
    %v278 = vld [vmem:[#allocation8 + $0x18] sm:$0xff]
    %v279 = vld [vmem:[#allocation8 + $0x20] sm:$0xff]
    %v280 = vld [vmem:[#allocation8 + $0x28] sm:$0xff]
    %v281 = vld [vmem:[#allocation8 + $0x30] sm:$0xff]
    %v282 = vld [vmem:[#allocation8 + $0x38] sm:$0xff]
    %v283 = vld [vmem:[#allocation8 + $0x40] sm:$0xff]
    %v284 = vld [vmem:[#allocation8 + $0x48] sm:$0xff]
    %v285 = vld [vmem:[#allocation8 + $0x50] sm:$0xff]
    %v286 = vld [vmem:[#allocation8 + $0x58] sm:$0xff]
    %v287 = vld [vmem:[#allocation8 + $0x60] sm:$0xff]
    %v288 = vld [vmem:[#allocation8 + $0x68] sm:$0xff]
    %v289 = vld [vmem:[#allocation8 + $0x70] sm:$0xff]
    %v290 = vld [vmem:[#allocation8 + $0x78] sm:$0xff]
    %v291 = vld [vmem:[#allocation8 + $0x80] sm:$0xff]
    %v292 = vld [vmem:[#allocation8 + $0x88] sm:$0xff]
    %v293 = vld [vmem:[#allocation8 + $0x90] sm:$0xff]
    %v294 = vld [vmem:[#allocation8 + $0x98] sm:$0xff]
    %v295 = vld [vmem:[#allocation8 + $0xa0] sm:$0xff]
    %v296 = vld [vmem:[#allocation8 + $0xa8] sm:$0xff]
    %v297 = vld [vmem:[#allocation8 + $0xb0] sm:$0xff]
    %v298 = vld [vmem:[#allocation8 + $0xb8] sm:$0xff]
    %v299 = vld [vmem:[#allocation8 + $0xc0] sm:$0xff]
    %v300 = vld [vmem:[#allocation8 + $0xc8] sm:$0xff]
    %v301 = vld [vmem:[#allocation8 + $0xd0] sm:$0xff]
    %v302 = vld [vmem:[#allocation8 + $0xd8] sm:$0xff]
    %v303 = vld [vmem:[#allocation8 + $0xe0] sm:$0xff]
    %v304 = vld [vmem:[#allocation8 + $0xe8] sm:$0xff]
    %v305 = vld [vmem:[#allocation8 + $0xf0] sm:$0xff]
    %v306 = vld [vmem:[#allocation8 + $0xf8] sm:$0xff]
    %v307 = vld [vmem:[%s5] sm:$0x3]
    %v309 = vlaneseq
    %v310 = vshrl.u32 %v309, 7
    %v311 = vsub.s32 0, %v310
    %v312 = vrot.slane %v307, %v311
    %v313 = vlaneseq
    %v314 = vshrl.u32 %v313, 7
    %v315 = vsub.s32 1, %v314
    %v316 = vrot.slane %v307, %v315
    %319 = vmatprep.subr.mxu0 %v306
    %320 = vmatpush1.msra.mxu0 %v305
    %321 = vmatprep.subr.mxu0 %v304
    %322 = vmatpush1.msra.mxu0 %v303
    %323 = vmatprep.subr.mxu0 %v302
    %324 = vmatpush1.msra.mxu0 %v301
    %325 = vmatprep.subr.mxu0 %v300
    %326 = vmatpush1.msra.mxu0 %v299
    %327 = vmatprep.subr.mxu0 %v298
    %328 = vmatpush1.msra.mxu0 %v297
    %329 = vmatprep.subr.mxu0 %v296
    %330 = vmatpush1.msra.mxu0 %v295
    %331 = vmatprep.subr.mxu0 %v294
    %332 = vmatpush1.msra.mxu0 %v293
    %333 = vmatprep.subr.mxu0 %v292
    %334 = vmatpush1.msra.mxu0 %v291
    %335 = vmatprep.subr.mxu0 %v290
    %336 = vmatpush1.msra.mxu0 %v289
    %337 = vmatprep.subr.mxu0 %v288
    %338 = vmatpush1.msra.mxu0 %v287
    %339 = vmatprep.subr.mxu0 %v286
    %340 = vmatpush1.msra.mxu0 %v285
    %341 = vmatprep.subr.mxu0 %v284
    %342 = vmatpush1.msra.mxu0 %v283
    %343 = vmatprep.subr.mxu0 %v282
    %344 = vmatpush1.msra.mxu0 %v281
    %345 = vmatprep.subr.mxu0 %v280
    %346 = vmatpush1.msra.mxu0 %v279
    %347 = vmatprep.subr.mxu0 %v278
    %348 = vmatpush1.msra.mxu0 %v277
    %349 = vmatprep.subr.mxu0 %v276
    %350 = vmatpush1.msra.mxu0 %v275
    %351 = vmatprep.subr.mxu0 0.0
    %352 = vmatpush2.msra.mxu0 0.0
    %353 = vmatprep.subr.mxu0 0.0
    %354 = vmatpush2.msra.mxu0 0.0
    %355 = vmatprep.subr.mxu0 0.0
    %356 = vmatpush2.msra.mxu0 0.0
    %357 = vmatprep.subr.mxu0 0.0
    %358 = vmatpush2.msra.mxu0 0.0
    %359 = vmatprep.subr.mxu0 0.0
    %360 = vmatpush2.msra.mxu0 0.0
    %361 = vmatprep.subr.mxu0 0.0
    %362 = vmatpush2.msra.mxu0 0.0
    %363 = vmatprep.subr.mxu0 0.0
    %364 = vmatpush2.msra.mxu0 0.0
    %365 = vmatprep.subr.mxu0 0.0
    %366 = vmatpush2.msra.mxu0 0.0
    %367 = vmatprep.subr.mxu0 0.0
    %368 = vmatpush2.msra.mxu0 0.0
    %369 = vmatprep.subr.mxu0 0.0
    %370 = vmatpush2.msra.mxu0 0.0
    %371 = vmatprep.subr.mxu0 0.0
    %372 = vmatpush2.msra.mxu0 0.0
    %373 = vmatprep.subr.mxu0 0.0
    %374 = vmatpush2.msra.mxu0 0.0
    %375 = vmatprep.subr.mxu0 0.0
    %376 = vmatpush2.msra.mxu0 0.0
    %377 = vmatprep.subr.mxu0 0.0
    %378 = vmatpush2.msra.mxu0 0.0
    %379 = vmatprep.subr.mxu0 0.0
    %380 = vmatpush2.msra.mxu0 0.0
    %381 = vmatprep.subr.mxu0 0.0
    %382 = vmatpush2.msra.mxu0 0.0
    %383 = vmatprep.mubr.f32.mxu0 0.0
    %384 = vmatmul.mubr.f32.gmra.mxu0 %v274
    %v385 = vpop.f32.mrf.mxu0
    %v386 = vadd.f32 %v312, %v385
    %v387 = vpop.f32.mrf.mxu0
    %v388 = vadd.f32 %v316, %v387
    %389 = vdwg.mxu0
    %v390 = vmul.f32 %v386, 0.5
    %v391 = vmul.f32 %v388, 0.5
    %v392 = vmul.f32 %v386, 0.70710677
    %v393 = vmul.f32 %v388, 0.70710677
    %v394 = verf.f32.pop %v392
    %v395 = verf.f32.pop %v393
    %v396 = vadd.f32 %v394, 1.0
    %v397 = vadd.f32 %v395, 1.0
    %v398 = vmul.f32 %v390, %v396
    %v399 = vmul.f32 %v391, %v397
    %v400 = vld [vmem:[#allocation10] sm:$0xff]
    %v401 = vld [vmem:[#allocation10 + $0x8] sm:$0xff]
    %v402 = vld [vmem:[#allocation10 + $0x10] sm:$0xff]
    %v403 = vld [vmem:[#allocation10 + $0x18] sm:$0xff]
    %v404 = vld [vmem:[#allocation10 + $0x20] sm:$0xff]
    %v405 = vld [vmem:[#allocation10 + $0x28] sm:$0xff]
    %v406 = vld [vmem:[#allocation10 + $0x30] sm:$0xff]
    %v407 = vld [vmem:[#allocation10 + $0x38] sm:$0xff]
    %v408 = vld [vmem:[#allocation10 + $0x40] sm:$0xff]
    %v409 = vld [vmem:[#allocation10 + $0x48] sm:$0xff]
    %v410 = vld [vmem:[#allocation10 + $0x50] sm:$0xff]
    %v411 = vld [vmem:[#allocation10 + $0x58] sm:$0xff]
    %v412 = vld [vmem:[#allocation10 + $0x60] sm:$0xff]
    %v413 = vld [vmem:[#allocation10 + $0x68] sm:$0xff]
    %v414 = vld [vmem:[#allocation10 + $0x70] sm:$0xff]
    %v415 = vld [vmem:[#allocation10 + $0x78] sm:$0xff]
    %v416 = vld [vmem:[#allocation10 + $0x80] sm:$0xff]
    %v417 = vld [vmem:[#allocation10 + $0x88] sm:$0xff]
    %v418 = vld [vmem:[#allocation10 + $0x90] sm:$0xff]
    %v419 = vld [vmem:[#allocation10 + $0x98] sm:$0xff]
    %v420 = vld [vmem:[#allocation10 + $0xa0] sm:$0xff]
    %v421 = vld [vmem:[#allocation10 + $0xa8] sm:$0xff]
    %v422 = vld [vmem:[#allocation10 + $0xb0] sm:$0xff]
    %v423 = vld [vmem:[#allocation10 + $0xb8] sm:$0xff]
    %v424 = vld [vmem:[#allocation10 + $0xc0] sm:$0xff]
    %v425 = vld [vmem:[#allocation10 + $0xc8] sm:$0xff]
    %v426 = vld [vmem:[#allocation10 + $0xd0] sm:$0xff]
    %v427 = vld [vmem:[#allocation10 + $0xd8] sm:$0xff]
    %v428 = vld [vmem:[#allocation10 + $0xe0] sm:$0xff]
    %v429 = vld [vmem:[#allocation10 + $0xe8] sm:$0xff]
    %v430 = vld [vmem:[#allocation10 + $0xf0] sm:$0xff]
    %v431 = vld [vmem:[#allocation10 + $0xf8] sm:$0xff]
    %v432 = vld [vmem:[%s7] sm:$0x1]
    %v434 = vlaneseq
    %v435 = vshrl.u32 %v434, 7
    %v436 = vsub.s32 0, %v435
    %v437 = vrot.slane %v432, %v436
    %439 = vmatprep.subr.mxu0 0.0
    %440 = vmatpush1.msra.mxu0 %v415
    %441 = vmatprep.subr.mxu0 0.0
    %442 = vmatpush1.msra.mxu0 %v414
    %443 = vmatprep.subr.mxu0 0.0
    %444 = vmatpush1.msra.mxu0 %v413
    %445 = vmatprep.subr.mxu0 0.0
    %446 = vmatpush1.msra.mxu0 %v412
    %447 = vmatprep.subr.mxu0 0.0
    %448 = vmatpush1.msra.mxu0 %v411
    %449 = vmatprep.subr.mxu0 0.0
    %450 = vmatpush1.msra.mxu0 %v410
    %451 = vmatprep.subr.mxu0 0.0
    %452 = vmatpush1.msra.mxu0 %v409
    %453 = vmatprep.subr.mxu0 0.0
    %454 = vmatpush1.msra.mxu0 %v408
    %455 = vmatprep.subr.mxu0 0.0
    %456 = vmatpush1.msra.mxu0 %v407
    %457 = vmatprep.subr.mxu0 0.0
    %458 = vmatpush1.msra.mxu0 %v406
    %459 = vmatprep.subr.mxu0 0.0
    %460 = vmatpush1.msra.mxu0 %v405
    %461 = vmatprep.subr.mxu0 0.0
    %462 = vmatpush1.msra.mxu0 %v404
    %463 = vmatprep.subr.mxu0 0.0
    %464 = vmatpush1.msra.mxu0 %v403
    %465 = vmatprep.subr.mxu0 0.0
    %466 = vmatpush1.msra.mxu0 %v402
    %467 = vmatprep.subr.mxu0 0.0
    %468 = vmatpush1.msra.mxu0 %v401
    %469 = vmatprep.subr.mxu0 0.0
    %470 = vmatpush1.msra.mxu0 %v400
    %471 = vmatprep.subr.mxu0 0.0
    %472 = vmatpush2.msra.mxu0 %v431
    %473 = vmatprep.subr.mxu0 0.0
    %474 = vmatpush2.msra.mxu0 %v430
    %475 = vmatprep.subr.mxu0 0.0
    %476 = vmatpush2.msra.mxu0 %v429
    %477 = vmatprep.subr.mxu0 0.0
    %478 = vmatpush2.msra.mxu0 %v428
    %479 = vmatprep.subr.mxu0 0.0
    %480 = vmatpush2.msra.mxu0 %v427
    %481 = vmatprep.subr.mxu0 0.0
    %482 = vmatpush2.msra.mxu0 %v426
    %483 = vmatprep.subr.mxu0 0.0
    %484 = vmatpush2.msra.mxu0 %v425
    %485 = vmatprep.subr.mxu0 0.0
    %486 = vmatpush2.msra.mxu0 %v424
    %487 = vmatprep.subr.mxu0 0.0
    %488 = vmatpush2.msra.mxu0 %v423
    %489 = vmatprep.subr.mxu0 0.0
    %490 = vmatpush2.msra.mxu0 %v422
    %491 = vmatprep.subr.mxu0 0.0
    %492 = vmatpush2.msra.mxu0 %v421
    %493 = vmatprep.subr.mxu0 0.0
    %494 = vmatpush2.msra.mxu0 %v420
    %495 = vmatprep.subr.mxu0 0.0
    %496 = vmatpush2.msra.mxu0 %v419
    %497 = vmatprep.subr.mxu0 0.0
    %498 = vmatpush2.msra.mxu0 %v418
    %499 = vmatprep.subr.mxu0 0.0
    %500 = vmatpush2.msra.mxu0 %v417
    %501 = vmatprep.subr.mxu0 0.0
    %502 = vmatpush2.msra.mxu0 %v416
    %503 = vmatprep.mubr.f32.mxu0 %v399
    %504 = vmatmul.mubr.f32.gmra.mxu0 %v398
    %v505 = vpop.f32.mrf.mxu0
    %v506 = vadd.f32 %v437, %v505
    %v507 = vpop.f32.mrf.mxu0
    %508 = vdwg.mxu0
    %509 = vst [vmem:[#allocation11] sm:$0xf] %v506
    // Predicated region
    $region54: #{tpu_custom_call.1} parent=1 // pred_check
      _
    $region55: #{tpu_custom_call.1} parent=1 // pred_check_branch
      %511 = sbr.rel (0) target = $region57
    $region56: #{tpu_custom_call.1} parent=1 // pred_region
      %s513 = ssub.s32 64, 64
      %514 = vsyncadd [#allocation4], %s513
      %s516 = sshll.u32 [#allocation11], 4
      %s517 = int_to_ptr.vmem [resolvable:$true] %s516
      %519 = dma.vmem_to_hbm [thread:$0]  %s517, 64, %s8, [#allocation4]
    $region57: #{tpu_custom_call.1} parent=1 // pred_fallthru
      _
    // Predicated region
    $region58: #{tpu_custom_call.1} parent=1 // pred_check
      _
    $region59: #{tpu_custom_call.1} parent=1 // pred_check_branch
      %521 = sbr.rel (0) target = $region61
    $region60: #{tpu_custom_call.1} parent=1 // pred_region
      %522 = dma.done [#allocation4], 64
    $region61: #{tpu_custom_call.1} parent=1 // pred_fallthru
      _
    %523 = vsyncpa [#allocation3], 1
    %524 = vsyncpa [#allocation6], 1
    %525 = vsyncpa [#allocation9], 1
    %526 = vsyncpa [#allocation4], 1

</llo_original>
